<compile_context>
chip_gen: v5e
topology: v5e:2x2
jax: 0.10.0
libtpu: 0.0.40
codegen_flags: <defaults>
</compile_context>

<pallas_src>
import functools

import jax
import jax.numpy as jnp
from jax import lax
from jax.experimental import pallas as pl
from jax.experimental.pallas import tpu as pltpu


def _round_up(n: int, m: int) -> int:
    return ((n + m - 1) // m) * m


def _pick_vmem_limit() -> int:
    """48 MiB on v7x (64 MiB/TC physical), 64 MiB on v5e/v6e (128 MiB)."""
    try:
        cap = pltpu.get_tpu_info().vmem_capacity_bytes
    except Exception:
        cap = 128 * 1024 * 1024
    if cap <= 64 * 1024 * 1024:
        return 48 * 1024 * 1024
    return 64 * 1024 * 1024


_VMEM_LIMIT = _pick_vmem_limit()

# Sequences whose padded length fits this use the single fused kernel.
_FUSE_MAX_ROWS = 512
# Flash-path tile sizes (rows). tq=256 targets the v6e/v7x 256x256 MXU.
_TQ = 256
_TK = 256


# ----------------------------------------------------------------------------
# Kernel A (small path): fused QKV projection + attention, whole seq resident.
# ----------------------------------------------------------------------------
def _fused_attention_kernel(x_ref, w_ref, o_ref, *, d_pad, seq_len):
    s_pad = x_ref.shape[0]
    op_dtype = x_ref.dtype  # MXU operand dtype (f32 or bf16)

    qkv = jnp.dot(x_ref[...], w_ref[...],
                  preferred_element_type=jnp.float32)          # (s_pad, 3*d_pad)
    q = qkv[:, :d_pad].astype(op_dtype)                        # scale pre-folded
    k = qkv[:, d_pad:2 * d_pad].astype(op_dtype)
    v = qkv[:, 2 * d_pad:].astype(op_dtype)

    # q @ k^T by contracting the last dims directly (no XLU transpose of K).
    scores = lax.dot_general(q, k, (((1,), (1,)), ((), ())),
                             preferred_element_type=jnp.float32)  # (s_pad, s_pad)

    if seq_len < s_pad:  # static: mask padded KV rows before max/sum.
        kv_ids = lax.broadcasted_iota(jnp.int32, scores.shape, 1)
        scores = jnp.where(kv_ids < seq_len, scores, jnp.float32(-1e30))

    m = jnp.max(scores, axis=-1, keepdims=True)
    e = jnp.exp(scores - m)
    denom = jnp.sum(e, axis=-1, keepdims=True)
    attn = e * pl.reciprocal(denom, approx=True)               # EUP divide

    out = jnp.dot(attn.astype(op_dtype), v,
                  preferred_element_type=jnp.float32)          # (s_pad, d_pad)
    o_ref[...] = out.astype(o_ref.dtype)


# ----------------------------------------------------------------------------
# Kernel B1 (large path): fused QKV projection, emits Q and packed [K|V].
# ----------------------------------------------------------------------------
def _qkv_projection_kernel(x_ref, w_ref, q_ref, kv_ref, *, d_pad):
    qkv = jnp.dot(x_ref[...], w_ref[...],
                  preferred_element_type=jnp.float32)          # (tp, 3*d_pad)
    q_ref[...] = qkv[:, :d_pad].astype(q_ref.dtype)
    kv_ref[...] = qkv[:, d_pad:].astype(kv_ref.dtype)


# ----------------------------------------------------------------------------
# Kernel B2 (large path): flash attention — Q tile resident, KV chunks
# streamed along an "arbitrary" grid axis with online softmax in scratch.
# ----------------------------------------------------------------------------
def _flash_attention_kernel(q_ref, kv_ref, o_ref, m_sc, l_sc, acc_sc,
                            *, d_pad, seq_len, s_pad):
    kv_idx = pl.program_id(1)

    @pl.when(kv_idx == 0)
    def _():
        m_sc[...] = jnp.full_like(m_sc, -jnp.inf)
        l_sc[...] = jnp.zeros_like(l_sc)
        acc_sc[...] = jnp.zeros_like(acc_sc)

    q = q_ref[...]                                             # (tq, d_pad)
    kv = kv_ref[...]                                           # (tk, 2*d_pad)
    k = kv[:, :d_pad]
    v = kv[:, d_pad:]
    tk = kv_ref.shape[0]

    s = lax.dot_general(q, k, (((1,), (1,)), ((), ())),
                        preferred_element_type=jnp.float32)    # (tq, tk) f32

    if seq_len < s_pad:  # static: only the last chunk contains padded rows.
        col = kv_idx * tk + lax.broadcasted_iota(jnp.int32, s.shape, 1)
        s = jnp.where(col < seq_len, s, jnp.float32(-1e30))

    m_prev = m_sc[...]
    m_new = jnp.maximum(m_prev, jnp.max(s, axis=-1, keepdims=True))
    alpha = jnp.exp(m_prev - m_new)
    p = jnp.exp(s - m_new)
    l_sc[...] = alpha * l_sc[...] + jnp.sum(p, axis=-1, keepdims=True)
    acc_sc[...] = alpha * acc_sc[...] + jnp.dot(
        p.astype(v.dtype), v, preferred_element_type=jnp.float32)
    m_sc[...] = m_new

    @pl.when(kv_idx == pl.num_programs(1) - 1)
    def _():
        o_ref[...] = (acc_sc[...] * pl.reciprocal(l_sc[...], approx=True)
                      ).astype(o_ref.dtype)


def _kv_chunk_spec(tk, width):
    idx = lambda i, j: (j, 0)
    try:  # 3-deep buffering on the streamed KV chunks (default is 2).
        return pl.BlockSpec((tk, width), idx, pipeline_mode=pl.Buffered(3))
    except TypeError:  # BlockSpec without pipeline_mode support
        return pl.BlockSpec((tk, width), idx)


# ----------------------------------------------------------------------------
# Wrapper
# ----------------------------------------------------------------------------
@functools.partial(jax.jit, static_argnames=("matmul_dtype",))
def self_attention_v1(x, w_query, w_key, w_value, *, matmul_dtype=jnp.bfloat16):
    """Pallas implementation of SelfAttention_v1.forward (context vectors)."""
    seq_len, d_in = x.shape
    d_out = w_query.shape[1]
    out_dtype = x.dtype

    itemsize = jnp.dtype(matmul_dtype).itemsize
    row_align = 8 if itemsize >= 4 else (16 if itemsize == 2 else 32)
    d_pad = _round_up(d_out, 128)                 # lane-dense feature dim
    scale = float(d_out) ** -0.5

    # Host-side packing: scale folded into W_query at f32, fused lane-padded
    # [Q | K | V] weight, row-padded x.
    w_qkv = jnp.zeros((d_in, 3 * d_pad), dtype=jnp.float32)
    w_qkv = w_qkv.at[:, 0:d_out].set(w_query.astype(jnp.float32) * scale)
    w_qkv = w_qkv.at[:, d_pad:d_pad + d_out].set(w_key.astype(jnp.float32))
    w_qkv = w_qkv.at[:, 2 * d_pad:2 * d_pad + d_out].set(
        w_value.astype(jnp.float32))
    w_qkv = w_qkv.astype(matmul_dtype)

    use_fused = seq_len <= _FUSE_MAX_ROWS
    s_pad = (_round_up(seq_len, row_align) if use_fused
             else _round_up(seq_len, max(_TQ, _TK)))

    x_p = jnp.zeros((s_pad, d_in), dtype=matmul_dtype)
    x_p = x_p.at[:seq_len, :].set(x.astype(matmul_dtype))

    if use_fused:
        # ---- small-sequence path: single fused kernel, no HBM round-trip ---
        # (At tiny shapes one launch beats 2-TC sharding of two launches.)
        kernel = functools.partial(
            _fused_attention_kernel, d_pad=d_pad, seq_len=seq_len)
        out_padded = pl.pallas_call(
            kernel,
            out_shape=jax.ShapeDtypeStruct((s_pad, d_pad), out_dtype),
            grid=(1,),
            in_specs=[
                pl.BlockSpec((s_pad, d_in), lambda i: (0, 0)),
                pl.BlockSpec((d_in, 3 * d_pad), lambda i: (0, 0)),
            ],
            out_specs=pl.BlockSpec((s_pad, d_pad), lambda i: (0, 0)),
            compiler_params=pltpu.CompilerParams(
                dimension_semantics=("arbitrary",),
                vmem_limit_bytes=_VMEM_LIMIT),
            cost_estimate=pl.CostEstimate(
                flops=2 * s_pad * d_in * 3 * d_pad + 4 * s_pad * s_pad * d_pad,
                transcendentals=s_pad * s_pad,
                bytes_accessed=(s_pad * d_in + d_in * 3 * d_pad) * itemsize
                + s_pad * d_pad * jnp.dtype(out_dtype).itemsize),
        )(x_p, w_qkv)
        return out_padded[:seq_len, :d_out]

    # ---- large-sequence path: QKV projection + flash attention -------------
    num_q_tiles = s_pad // _TQ
    num_kv_tiles = s_pad // _TK

    proj_kernel = functools.partial(_qkv_projection_kernel, d_pad=d_pad)
    q_arr, kv_arr = pl.pallas_call(
        proj_kernel,
        out_shape=(jax.ShapeDtypeStruct((s_pad, d_pad), matmul_dtype),
                   jax.ShapeDtypeStruct((s_pad, 2 * d_pad), matmul_dtype)),
        grid=(num_q_tiles,),
        in_specs=[
            pl.BlockSpec((_TQ, d_in), lambda i: (i, 0)),
            pl.BlockSpec((d_in, 3 * d_pad), lambda i: (0, 0)),   # resident W
        ],
        out_specs=(pl.BlockSpec((_TQ, d_pad), lambda i: (i, 0)),
                   pl.BlockSpec((_TQ, 2 * d_pad), lambda i: (i, 0))),
        compiler_params=pltpu.CompilerParams(
            dimension_semantics=("parallel",),
            vmem_limit_bytes=_VMEM_LIMIT),
        cost_estimate=pl.CostEstimate(
            flops=2 * s_pad * d_in * 3 * d_pad,
            transcendentals=0,
            bytes_accessed=(s_pad * d_in + d_in * 3 * d_pad
                            + s_pad * 3 * d_pad) * itemsize),
    )(x_p, w_qkv)

    flash_kernel = functools.partial(
        _flash_attention_kernel, d_pad=d_pad, seq_len=seq_len, s_pad=s_pad)
    out_padded = pl.pallas_call(
        flash_kernel,
        out_shape=jax.ShapeDtypeStruct((s_pad, d_pad), out_dtype),
        grid=(num_q_tiles, num_kv_tiles),
        in_specs=[
            pl.BlockSpec((_TQ, d_pad), lambda i, j: (i, 0)),     # Q (resident over j)
            _kv_chunk_spec(_TK, 2 * d_pad),                      # packed [K|V] chunk
        ],
        out_specs=pl.BlockSpec((_TQ, d_pad), lambda i, j: (i, 0)),
        scratch_shapes=[
            pltpu.VMEM((_TQ, 1), jnp.float32),       # running max m
            pltpu.VMEM((_TQ, 1), jnp.float32),       # running sum l
            pltpu.VMEM((_TQ, d_pad), jnp.float32),   # output accumulator
        ],
        compiler_params=pltpu.CompilerParams(
            dimension_semantics=("parallel", "arbitrary"),
            vmem_limit_bytes=_VMEM_LIMIT),
        cost_estimate=pl.CostEstimate(
            flops=4 * s_pad * s_pad * d_pad,
            transcendentals=s_pad * s_pad,
            bytes_accessed=(num_kv_tiles * s_pad * d_pad
                            + num_q_tiles * s_pad * 2 * d_pad) * itemsize
            + s_pad * d_pad * jnp.dtype(out_dtype).itemsize),
    )(q_arr, kv_arr)

    return out_padded[:seq_len, :d_out]


def self_attention_v1_ref(x, w_query, w_key, w_value):
    """Pure-JAX reference mirroring the PyTorch forward."""
    keys = x @ w_key
    queries = x @ w_query
    values = x @ w_value
    scores = queries @ keys.T
    weights = jax.nn.softmax(scores / jnp.sqrt(jnp.float32(keys.shape[-1])),
                             axis=-1)
    return weights @ values


if __name__ == "__main__":
    key = jax.random.PRNGKey(0)

    def make_inputs(k, seq_len, d_in, d_out):
        kx, kq, kk, kv = jax.random.split(k, 4)
        x = jax.random.normal(kx, (seq_len, d_in), dtype=jnp.float32)
        wq = jax.random.uniform(kq, (d_in, d_out), dtype=jnp.float32)
        wk = jax.random.uniform(kk, (d_in, d_out), dtype=jnp.float32)
        wv = jax.random.uniform(kv, (d_in, d_out), dtype=jnp.float32)
        return x, wq, wk, wv

    k1, k2, k3 = jax.random.split(key, 3)

    # Case 1: fused small path, f32 operands (seq=8, d_in=32, d_out=16).
    x, wq, wk, wv = make_inputs(k1, 8, 32, 16)
    ref = jax.block_until_ready(self_attention_v1_ref(x, wq, wk, wv))
    out = jax.block_until_ready(
        self_attention_v1(x, wq, wk, wv, matmul_dtype=jnp.float32))
    assert out.shape == (8, 16)
    assert jnp.allclose(out, ref, atol=1e-2, rtol=1e-2), float(
        jnp.max(jnp.abs(out - ref)))

    # Case 1b: bf16 operands (v6e/v7x MXU fast path) — loose smoke check.
    out_bf16 = jax.block_until_ready(
        self_attention_v1(x, wq, wk, wv, matmul_dtype=jnp.bfloat16))
    assert out_bf16.shape == (8, 16)
    assert bool(jnp.all(jnp.isfinite(out_bf16)))
    assert jnp.allclose(out_bf16, ref, atol=0.5, rtol=0.5)

    # Case 2: ragged chapter shapes (seq=6, d_in=10, d_out=1 as in the book)
    # exercising row padding, lane padding and the KV softmax mask.
    x2, wq2, wk2, wv2 = make_inputs(k2, 6, 10, 1)
    out2 = jax.block_until_ready(
        self_attention_v1(x2, wq2, wk2, wv2, matmul_dtype=jnp.float32))
    ref2 = jax.block_until_ready(self_attention_v1_ref(x2, wq2, wk2, wv2))
    assert out2.shape == (6, 1)
    assert jnp.allclose(out2, ref2, atol=1e-2, rtol=1e-2), float(
        jnp.max(jnp.abs(out2 - ref2)))

    # Case 3: flash (KV-tiled, online-softmax) path: seq=640 > fused threshold.
    x3, wq3, wk3, wv3 = make_inputs(k3, 640, 32, 16)
    out3 = jax.block_until_ready(
        self_attention_v1(x3, wq3, wk3, wv3, matmul_dtype=jnp.float32))
    ref3 = jax.block_until_ready(self_attention_v1_ref(x3, wq3, wk3, wv3))
    assert out3.shape == (640, 16)
    assert jnp.allclose(out3, ref3, atol=1e-2, rtol=1e-2), float(
        jnp.max(jnp.abs(out3 - ref3)))

    print("KERNEL_OK")
</pallas_src>

<mosaic_0001>
module attributes {stable_mosaic.version = 11 : i64} {
  func.func @_fused_attention_kernel(%arg0: i32, %arg1: memref<8x32xf32, #tpu.memory_space<vmem>>, %arg2: memref<32x384xf32, #tpu.memory_space<vmem>>, %arg3: memref<8x128xf32, #tpu.memory_space<vmem>>) attributes {dimension_semantics = [#tpu.dimension_semantics<arbitrary>], iteration_bounds = array<i64: 1>, scalar_prefetch = 0 : i64, scratch_operands = 0 : i64, tpu.core_type = #tpu.core_type<tc>, window_params = [{pipeline_mode = #tpu.pipeline_mode<synchronous>, transform_indices = @transform_0, window_bounds = array<i64: 8, 32>}, {pipeline_mode = #tpu.pipeline_mode<synchronous>, transform_indices = @transform_1, window_bounds = array<i64: 32, 384>}, {pipeline_mode = #tpu.pipeline_mode<synchronous>, transform_indices = @transform_2, window_bounds = array<i64: 8, 128>}]} {
    %c0 = arith.constant 0 : index
    %c0_0 = arith.constant 0 : index
    %0 = vector.load %arg1[%c0, %c0_0] : memref<8x32xf32, #tpu.memory_space<vmem>>, vector<8x32xf32>
    %c0_1 = arith.constant 0 : index
    %c0_2 = arith.constant 0 : index
    %1 = vector.load %arg2[%c0_1, %c0_2] : memref<32x384xf32, #tpu.memory_space<vmem>>, vector<32x384xf32>
    %cst = arith.constant dense<0.000000e+00> : vector<8x384xf32>
    %2 = tpu.matmul %0, %1, %cst {dimension_numbers = #tpu.dot_dimension_numbers<[1], [0], [0], [1], [0, 0, 1, 1], [], []>} : vector<8x32xf32>, vector<32x384xf32>, vector<8x384xf32> -> vector<8x384xf32>
    %3 = vector.extract_strided_slice %2 {offsets = [0, 0], sizes = [8, 128], strides = [1, 1]} : vector<8x384xf32> to vector<8x128xf32>
    %4 = vector.extract_strided_slice %2 {offsets = [0, 128], sizes = [8, 128], strides = [1, 1]} : vector<8x384xf32> to vector<8x128xf32>
    %5 = vector.extract_strided_slice %2 {offsets = [0, 256], sizes = [8, 128], strides = [1, 1]} : vector<8x384xf32> to vector<8x128xf32>
    %cst_3 = arith.constant dense<0.000000e+00> : vector<8x8xf32>
    %6 = tpu.matmul %3, %4, %cst_3 {dimension_numbers = #tpu.dot_dimension_numbers<[1], [1], [0], [0], [0, 0, 1, 0], [], []>} : vector<8x128xf32>, vector<8x128xf32>, vector<8x8xf32> -> vector<8x8xf32>
    %cst_4 = arith.constant dense<0xFF800000> : vector<8xf32>
    %7 = vector.multi_reduction <maximumf>, %6, %cst_4 [1] : vector<8x8xf32> to vector<8xf32>
    %8 = vector.shape_cast %7 : vector<8xf32> to vector<8x1xf32>
    %9 = vector.broadcast %8 : vector<8x1xf32> to vector<8x8xf32>
    %10 = arith.subf %6, %9 : vector<8x8xf32>
    %11 = math.exp %10 : vector<8x8xf32>
    %cst_5 = arith.constant dense<0.000000e+00> : vector<8xf32>
    %12 = vector.multi_reduction <add>, %11, %cst_5 [1] : vector<8x8xf32> to vector<8xf32>
    %13 = vector.shape_cast %12 : vector<8xf32> to vector<8x1xf32>
    %14 = tpu.reciprocal %13 {approx = true} : vector<8x1xf32> -> vector<8x1xf32>
    %15 = vector.broadcast %14 : vector<8x1xf32> to vector<8x8xf32>
    %16 = arith.mulf %11, %15 : vector<8x8xf32>
    %cst_6 = arith.constant dense<0.000000e+00> : vector<8x128xf32>
    %17 = tpu.matmul %16, %5, %cst_6 {dimension_numbers = #tpu.dot_dimension_numbers<[1], [0], [0], [1], [0, 0, 1, 1], [], []>} : vector<8x8xf32>, vector<8x128xf32>, vector<8x128xf32> -> vector<8x128xf32>
    %c0_7 = arith.constant 0 : index
    %c0_8 = arith.constant 0 : index
    %18 = vector.load %arg3[%c0_7, %c0_8] : memref<8x128xf32, #tpu.memory_space<vmem>>, vector<8x128xf32>
    tpu.vector_store %arg3[%c0_7, %c0_8], %17 {strides = array<i32>} : memref<8x128xf32, #tpu.memory_space<vmem>>, vector<8x128xf32>,
    return
  }
  func.func @transform_0(%arg0: i32) -> (i32, i32) {
    %c0_i32 = arith.constant 0 : i32
    %c0_i32_0 = arith.constant 0 : i32
    %c0_i32_1 = arith.constant 0 : i32
    return %c0_i32, %c0_i32_0 : i32, i32
  }
  func.func @transform_1(%arg0: i32) -> (i32, i32) {
    %c0_i32 = arith.constant 0 : i32
    %c0_i32_0 = arith.constant 0 : i32
    %c0_i32_1 = arith.constant 0 : i32
    return %c0_i32, %c0_i32_0 : i32, i32
  }
  func.func @transform_2(%arg0: i32) -> (i32, i32) {
    %c0_i32 = arith.constant 0 : i32
    %c0_i32_0 = arith.constant 0 : i32
    %c0_i32_1 = arith.constant 0 : i32
    return %c0_i32, %c0_i32_0 : i32, i32
  }
}

</mosaic_0001>

<llo_original>
// kernel: self_attention_v1.1
$region0: #{self_attention_v1.1}
  #allocation0 [shape = 'u32[]', space=smem, size = 0x4, offset = 0x4, fixed_abs, tag = 'smem constant byte address 0x4 - core index']
  #allocation1 [shape = 'u32[72,128]{1,0:T(1,128)}', space=vmem, size = 0x9000, scoped, tag = 'internal scratch']
  %s0 = inlined_call_operand.vmem [shape: f32[8,32], index: 0, kind: input, shape index: {}]
  %s1 = inlined_call_operand.vmem [shape: f32[32,384], index: 1, kind: input, shape index: {}]
  %s2 = inlined_call_operand.hbm [shape: f32[8,128], index: 2, kind: output, shape index: {}]
  %s3 = sld [smem:[#allocation0]]
  $region18: #{self_attention_v1.1} parent=0
    _
  %s5 = ssub.s32 1, %s3
  %s6 = scalar_select 0, %s5, %s3
  $region1: #{self_attention_v1.1} parent=0
    #allocation2 [shape = 'u8[4096]{0}', space=vmem, size = 0x1000, scoped, tag = 'output window, operand 0, single buffered']
    #allocation3 [shape = 's32[1]{0}', space=sflag, size = 0x4, scoped, tag = 'scoped memory for self_attention_v1.1']
    %7 = vsyncpa [#allocation3], 0
    // Predicated region
    $region2: #{self_attention_v1.1} parent=1 // pred_check
      _
    $region3: #{self_attention_v1.1} parent=1 // pred_check_branch
      %9 = sbr.rel (0) target = $region5
    $region4: #{self_attention_v1.1} parent=1 // pred_region
      _
    $region5: #{self_attention_v1.1} parent=1 // pred_fallthru
      _
    // Predicated region
    $region6: #{self_attention_v1.1} parent=1 // pred_check
      _
    $region7: #{self_attention_v1.1} parent=1 // pred_check_branch
      %11 = sbr.rel (0) target = $region9
    $region8: #{self_attention_v1.1} parent=1 // pred_region
      _
    $region9: #{self_attention_v1.1} parent=1 // pred_fallthru
      _
    %v12 = vld [vmem:[%s0] sm:$0xff]
    %v13 = vld [vmem:[%s1] sm:$0xff]
    %v14 = vld [vmem:[%s1 + $0x8] sm:$0xff]
    %v15 = vld [vmem:[%s1 + $0x10] sm:$0xff]
    %v16 = vld [vmem:[%s1 + $0x18] sm:$0xff]
    %v17 = vld [vmem:[%s1 + $0x20] sm:$0xff]
    %v18 = vld [vmem:[%s1 + $0x28] sm:$0xff]
    %v19 = vld [vmem:[%s1 + $0x30] sm:$0xff]
    %v20 = vld [vmem:[%s1 + $0x38] sm:$0xff]
    %v21 = vld [vmem:[%s1 + $0x40] sm:$0xff]
    %v22 = vld [vmem:[%s1 + $0x48] sm:$0xff]
    %v23 = vld [vmem:[%s1 + $0x50] sm:$0xff]
    %v24 = vld [vmem:[%s1 + $0x58] sm:$0xff]
    %vm25 = vcmask 261120
    %v27 = vsel %vm25, %v12, 0
    %29 = vmatpush.msra.mxu0 0.0
    %30 = vmatpush.msra.mxu0 0.0
    %31 = vmatpush.msra.mxu0 0.0
    %32 = vmatpush.msra.mxu0 0.0
    %33 = vmatpush.msra.mxu0 0.0
    %34 = vmatpush.msra.mxu0 0.0
    %35 = vmatpush.msra.mxu0 0.0
    %36 = vmatpush.msra.mxu0 0.0
    %37 = vmatpush.msra.mxu0 0.0
    %38 = vmatpush.msra.mxu0 0.0
    %39 = vmatpush.msra.mxu0 0.0
    %40 = vmatpush.msra.mxu0 0.0
    %41 = vmatpush.msra.mxu0 %v22
    %42 = vmatpush.msra.mxu0 %v19
    %43 = vmatpush.msra.mxu0 %v16
    %44 = vmatpush.msra.mxu0 %v13
    %45 = vmatmul.f32.gmra.mxu0 %v27
    %v46 = vpop.f32.mrf.mxu0
    %v47 = vadd.f32 0.0, %v46
    %48 = vdwg.mxu0
    %49 = vmatpush.msra.mxu0 0.0
    %50 = vmatpush.msra.mxu0 0.0
    %51 = vmatpush.msra.mxu0 0.0
    %52 = vmatpush.msra.mxu0 0.0
    %53 = vmatpush.msra.mxu0 0.0
    %54 = vmatpush.msra.mxu0 0.0
    %55 = vmatpush.msra.mxu0 0.0
    %56 = vmatpush.msra.mxu0 0.0
    %57 = vmatpush.msra.mxu0 0.0
    %58 = vmatpush.msra.mxu0 0.0
    %59 = vmatpush.msra.mxu0 0.0
    %60 = vmatpush.msra.mxu0 0.0
    %61 = vmatpush.msra.mxu0 %v23
    %62 = vmatpush.msra.mxu0 %v20
    %63 = vmatpush.msra.mxu0 %v17
    %64 = vmatpush.msra.mxu0 %v14
    %65 = vmatmul.f32.gmra.mxu0 %v27
    %v66 = vpop.f32.mrf.mxu0
    %v67 = vadd.f32 0.0, %v66
    %68 = vdwg.mxu0
    %69 = vmatpush.msra.mxu0 0.0
    %70 = vmatpush.msra.mxu0 0.0
    %71 = vmatpush.msra.mxu0 0.0
    %72 = vmatpush.msra.mxu0 0.0
    %73 = vmatpush.msra.mxu0 0.0
    %74 = vmatpush.msra.mxu0 0.0
    %75 = vmatpush.msra.mxu0 0.0
    %76 = vmatpush.msra.mxu0 0.0
    %77 = vmatpush.msra.mxu0 0.0
    %78 = vmatpush.msra.mxu0 0.0
    %79 = vmatpush.msra.mxu0 0.0
    %80 = vmatpush.msra.mxu0 0.0
    %81 = vmatpush.msra.mxu0 %v24
    %82 = vmatpush.msra.mxu0 %v21
    %83 = vmatpush.msra.mxu0 %v18
    %84 = vmatpush.msra.mxu0 %v15
    %85 = vmatmul.f32.gmra.mxu0 %v27
    %v86 = vpop.f32.mrf.mxu0
    %v87 = vadd.f32 0.0, %v86
    %88 = vdwg.mxu0
    %89 = vmatpush.xpose.msra.mxu0 0.0
    %90 = vmatpush.xpose.msra.mxu0 0.0
    %91 = vmatpush.xpose.msra.mxu0 0.0
    %92 = vmatpush.xpose.msra.mxu0 0.0
    %93 = vmatpush.xpose.msra.mxu0 0.0
    %94 = vmatpush.xpose.msra.mxu0 0.0
    %95 = vmatpush.xpose.msra.mxu0 0.0
    %96 = vmatpush.xpose.msra.mxu0 0.0
    %97 = vmatpush.xpose.msra.mxu0 0.0
    %98 = vmatpush.xpose.msra.mxu0 0.0
    %99 = vmatpush.xpose.msra.mxu0 0.0
    %100 = vmatpush.xpose.msra.mxu0 0.0
    %101 = vmatpush.xpose.msra.mxu0 0.0
    %102 = vmatpush.xpose.msra.mxu0 0.0
    %103 = vmatpush.xpose.msra.mxu0 0.0
    %104 = vmatpush.xpose.msra.mxu0 %v67
    %105 = vmatmul.f32.gmra.mxu0 %v47
    %v106 = vpop.f32.mrf.mxu0
    %v107 = vadd.f32 0.0, %v106
    %108 = vdwg.mxu0
    %vm109 = vcmask 64512
    %v110 = vsel %vm109, %v107, -inf
    %111 = vmax.xlane.f32.xlu0 %v110
    %v112 = vpop.xlane.xlu0 %111
    %v113 = vsub.f32 %v107, %v112
    %v114 = vmul.f32 %v113, 1.442695
    %v115 = vpow.pop %v114
    %v116 = vsel %vm109, %v115, 0.0
    %117 = vadd.xlane.f32.xlu0 %v116
    %v118 = vpop.xlane.xlu0 %117
    %v119 = vrcp.pop %v118
    %v120 = vmul.f32 %v115, %v119
    %v122 = vsel %vm109, %v120, 0
    %124 = vmatpush.msra.mxu0 0.0
    %125 = vmatpush.msra.mxu0 0.0
    %126 = vmatpush.msra.mxu0 0.0
    %127 = vmatpush.msra.mxu0 0.0
    %128 = vmatpush.msra.mxu0 0.0
    %129 = vmatpush.msra.mxu0 0.0
    %130 = vmatpush.msra.mxu0 0.0
    %131 = vmatpush.msra.mxu0 0.0
    %132 = vmatpush.msra.mxu0 0.0
    %133 = vmatpush.msra.mxu0 0.0
    %134 = vmatpush.msra.mxu0 0.0
    %135 = vmatpush.msra.mxu0 0.0
    %136 = vmatpush.msra.mxu0 0.0
    %137 = vmatpush.msra.mxu0 0.0
    %138 = vmatpush.msra.mxu0 0.0
    %139 = vmatpush.msra.mxu0 %v87
    %140 = vmatmul.f32.gmra.mxu0 %v122
    %v141 = vpop.f32.mrf.mxu0
    %v142 = vadd.f32 0.0, %v141
    %143 = vdwg.mxu0
    %144 = vst [vmem:[#allocation2] sm:$0xff] %v142
    // Predicated region
    $region10: #{self_attention_v1.1} parent=1 // pred_check
      _
    $region11: #{self_attention_v1.1} parent=1 // pred_check_branch
      %146 = sbr.rel (0) target = $region13
    $region12: #{self_attention_v1.1} parent=1 // pred_region
      %148 = vsyncadd [#allocation3], 0
      %s150 = sshll.u32 [#allocation2], 4
      %s151 = int_to_ptr.vmem [resolvable:$true] %s150
      %s152 = sshll.u32 %s2, 4
      %s153 = int_to_ptr.hbm [resolvable:$true] %s152
      %155 = dma.vmem_to_hbm [thread:$0]  %s151, 128, %s153, [#allocation3]
    $region13: #{self_attention_v1.1} parent=1 // pred_fallthru
      _
    // Predicated region
    $region14: #{self_attention_v1.1} parent=1 // pred_check
      _
    $region15: #{self_attention_v1.1} parent=1 // pred_check_branch
      %157 = sbr.rel (0) target = $region17
    $region16: #{self_attention_v1.1} parent=1 // pred_region
      %159 = dma.done [#allocation3], 128
    $region17: #{self_attention_v1.1} parent=1 // pred_fallthru
      _
    %160 = vsyncpa [#allocation3], 1

</llo_original>
